<compile_context>
chip_gen: v6e
topology: v6e:2x2x1
jax: 0.10.0
libtpu: 0.0.40
codegen_flags: <defaults>
</compile_context>

<pallas_src>
import functools
import math

import jax
import jax.numpy as jnp
from jax import lax
from jax.experimental import pallas as pl
from jax.experimental.pallas import tpu as pltpu


# ---------------------------------------------------------------------------
# helpers
# ---------------------------------------------------------------------------
def _round_up(n: int, m: int) -> int:
    return ((n + m - 1) // m) * m


def init_gat_params(key, in_channels: int, out_channels: int, dtype=jnp.float32):
    """Glorot-style init mirroring GATConv(heads=1)."""
    kw, ks, kd, kb = jax.random.split(key, 4)
    lim_w = math.sqrt(6.0 / (in_channels + out_channels))
    lim_a = math.sqrt(6.0 / (out_channels + 1))
    return {
        "weight":  jax.random.uniform(kw, (in_channels, out_channels), dtype, -lim_w, lim_w),
        "att_src": jax.random.uniform(ks, (out_channels,), dtype, -lim_a, lim_a),
        "att_dst": jax.random.uniform(kd, (out_channels,), dtype, -lim_a, lim_a),
        "bias":    0.1 * jax.random.normal(kb, (out_channels,), dtype),
    }


# ---------------------------------------------------------------------------
# Pallas kernels
# ---------------------------------------------------------------------------
def _linear_kernel(x_ref, w_ref, h_ref):
    """h = x @ W  (one row-tile per grid step, f32 accumulation on the MXU)."""
    h_ref[...] = jnp.dot(
        x_ref[...], w_ref[...], preferred_element_type=jnp.float32
    ).astype(h_ref.dtype)


def _gat_attention_kernel(h_dst_ref, h_src_ref, att_ref, bias_ref, adj_ref, o_ref,
                          *, negative_slope):
    """Masked attention softmax + aggregation for one tile of destination nodes."""
    f32 = jnp.float32
    tn, f = h_dst_ref.shape                     # (tile_n, fo_p)   -- static

    h_dst = h_dst_ref[...]                      # (tn, f)  destination-node features
    h_src = h_src_ref[...]                      # (Np, f)  all source-node features (resident)

    a_src_row = att_ref[0:1, :]                 # (1, f)
    a_dst_row = att_ref[1:2, :]                 # (1, f)

    # per-destination score  s_dst[i] = <h_i, a_dst>        (VPU mult + lane reduce)
    s_dst = jnp.sum(h_dst.astype(f32) * a_dst_row.astype(f32),
                    axis=-1, keepdims=True)                      # (tn, 1)

    # per-source scores broadcast along lanes via a q@k^T-style matmul
    # (every row of a_src_mat is a_src, so row i of s_src holds <h_j, a_src> for all j)
    a_src_mat = jnp.broadcast_to(a_src_row, (tn, f))             # (tn, f)
    s_src = lax.dot_general(a_src_mat, h_src,
                            (((1,), (1,)), ((), ())),
                            preferred_element_type=f32)          # (tn, Np)

    # raw edge scores + LeakyReLU (negative_slope=0.2), then mask non-edges
    e = s_dst + s_src                                            # (tn, Np)
    e = jnp.where(e > 0, e, f32(negative_slope) * e)
    mask = adj_ref[...] > 0
    e = jnp.where(mask, e, f32(-1e30))

    # row-wise (per destination node) softmax over its in-neighbours
    e = e - jnp.max(e, axis=-1, keepdims=True)
    p = jnp.exp(e)                               # exp(-1e30 - max) underflows to 0
    denom = jnp.sum(p, axis=-1, keepdims=True)
    attn = p / denom                                             # (tn, Np)

    # aggregation: out[i] = sum_j attn[i,j] * h[j]   (MXU matmul), then bias
    out = jnp.dot(attn.astype(h_src.dtype), h_src,
                  preferred_element_type=f32)                    # (tn, f)
    o_ref[...] = (out + bias_ref[...].astype(f32)).astype(o_ref.dtype)


# ---------------------------------------------------------------------------
# wrapper = GATLayer.forward(x, edge_index)
# ---------------------------------------------------------------------------
def gat_layer(x, edge_index, params, *, negative_slope: float = 0.2, tile_n: int = 32):
    """x: (N, in_channels), edge_index: (2, E) int [src; dst]. Returns (N, out_channels)."""
    assert tile_n % 8 == 0 and 128 % tile_n == 0, "tile_n must be 8/16/32/64/128"

    N, f_in = x.shape
    dtype = x.dtype
    w        = params["weight"].astype(dtype)      # (f_in, f_out)
    att_src  = params["att_src"].astype(dtype)     # (f_out,)
    att_dst  = params["att_dst"].astype(dtype)     # (f_out,)
    bias     = params["bias"].astype(dtype)        # (f_out,)
    f_out = w.shape[1]

    # ---- glue: edge_index -> dense adjacency, adj[dst, src] = 1, plus self loops ----
    # TODO(synk): the data-dependent scatter (edge_index -> adjacency) has no clean
    # Pallas TPU equivalent; it is done in plain JAX. For very large sparse graphs a
    # scalar-prefetch CSR gather kernel would replace this dense O(N^2) form.
    adj = jnp.zeros((N, N), dtype).at[edge_index[1], edge_index[0]].set(1.0)
    adj = jnp.maximum(adj, jnp.eye(N, dtype=dtype))

    # ---- pad to lane-dense / sublane-aligned TPU shapes (multiples of 128) ----
    lane = 128
    n_p  = _round_up(max(N, tile_n), lane)   # padded node count (divisible by tile_n)
    fi_p = _round_up(f_in, lane)
    fo_p = _round_up(f_out, lane)

    x_p    = jnp.zeros((n_p, fi_p), dtype).at[:N, :f_in].set(x)
    w_p    = jnp.zeros((fi_p, fo_p), dtype).at[:f_in, :f_out].set(w)
    adj_p  = jnp.zeros((n_p, n_p), dtype).at[:N, :N].set(adj)
    att_p  = (jnp.zeros((2, fo_p), dtype)
              .at[0, :f_out].set(att_src)
              .at[1, :f_out].set(att_dst))
    bias_p = jnp.zeros((1, fo_p), dtype).at[0, :f_out].set(bias)

    grid = (n_p // tile_n,)
    cparams = pltpu.CompilerParams(dimension_semantics=("parallel",))
    itemsize = jnp.dtype(dtype).itemsize

    # ---- phase 1: h = x @ W, row-tiled (auto-pipelined) ----
    h_p = pl.pallas_call(
        _linear_kernel,
        out_shape=jax.ShapeDtypeStruct((n_p, fo_p), dtype),
        grid=grid,
        in_specs=[
            pl.BlockSpec((tile_n, fi_p), lambda i: (i, 0)),
            pl.BlockSpec((fi_p, fo_p),   lambda i: (0, 0)),   # W resident
        ],
        out_specs=pl.BlockSpec((tile_n, fo_p), lambda i: (i, 0)),
        compiler_params=cparams,
    )(x_p, w_p)

    # ---- phase 2: attention + aggregation, tiled over destination-node rows ----
    cost = pl.CostEstimate(
        flops=4 * n_p * n_p * fo_p,                  # score matmul + aggregation matmul
        transcendentals=n_p * n_p,                   # exp per (dst, src) pair
        bytes_accessed=(2 * n_p * fo_p + n_p * n_p + n_p * fo_p) * itemsize,
    )
    out_p = pl.pallas_call(
        functools.partial(_gat_attention_kernel, negative_slope=negative_slope),
        out_shape=jax.ShapeDtypeStruct((n_p, fo_p), dtype),
        grid=grid,
        in_specs=[
            pl.BlockSpec((tile_n, fo_p), lambda i: (i, 0)),   # h, destination rows (tiled)
            pl.BlockSpec((n_p, fo_p),    lambda i: (0, 0)),   # h, all sources (resident)
            pl.BlockSpec((2, fo_p),      lambda i: (0, 0)),   # [a_src; a_dst] (resident)
            pl.BlockSpec((1, fo_p),      lambda i: (0, 0)),   # bias (resident)
            pl.BlockSpec((tile_n, n_p),  lambda i: (i, 0)),   # adjacency rows (tiled)
        ],
        out_specs=pl.BlockSpec((tile_n, fo_p), lambda i: (i, 0)),
        compiler_params=cparams,
        cost_estimate=cost,
    )(h_p, h_p, att_p, bias_p, adj_p)

    return out_p[:N, :f_out]


# ---------------------------------------------------------------------------
# pure-JAX reference (sparse edge-wise GATConv semantics) for validation
# ---------------------------------------------------------------------------
def gat_reference(x, edge_index, params, *, negative_slope: float = 0.2):
    n = x.shape[0]
    w, a_src, a_dst, b = (params["weight"], params["att_src"],
                          params["att_dst"], params["bias"])
    loop = jnp.arange(n)
    src = jnp.concatenate([edge_index[0], loop])     # add self loops
    dst = jnp.concatenate([edge_index[1], loop])

    h = x @ w
    s_src = h @ a_src
    s_dst = h @ a_dst
    e = s_src[src] + s_dst[dst]
    e = jnp.where(e > 0, e, negative_slope * e)

    e_max = jax.ops.segment_max(e, dst, num_segments=n)
    p = jnp.exp(e - e_max[dst])
    denom = jax.ops.segment_sum(p, dst, num_segments=n)
    alpha = p / denom[dst]
    out = jax.ops.segment_sum(alpha[:, None] * h[src], dst, num_segments=n)
    return out + b


# ---------------------------------------------------------------------------
# demo / self-check
# ---------------------------------------------------------------------------
if __name__ == "__main__":
    N, IN_C, OUT_C = 12, 16, 32
    key = jax.random.PRNGKey(0)
    kx, kp = jax.random.split(key)

    x = jax.random.normal(kx, (N, IN_C), dtype=jnp.float32)

    # deterministic small graph: bidirectional ring + skip-3 chords (36 unique edges)
    i = jnp.arange(N)
    src = jnp.concatenate([i, (i + 1) % N, i])
    dst = jnp.concatenate([(i + 1) % N, i, (i + 3) % N])
    edge_index = jnp.stack([src, dst]).astype(jnp.int32)

    params = init_gat_params(kp, IN_C, OUT_C)

    out = gat_layer(x, edge_index, params, tile_n=32)
    out = jax.block_until_ready(out)
    assert out.shape == (N, OUT_C)

    ref = gat_reference(x, edge_index, params)
    max_err = jnp.max(jnp.abs(out - ref))
    assert jnp.allclose(out, ref, atol=5e-2, rtol=5e-2), f"max |err| = {max_err}"

    print("KERNEL_OK")
</pallas_src>

<mosaic_0001>
module attributes {stable_mosaic.version = 11 : i64} {
  func.func @_linear_kernel(%arg0: i32, %arg1: memref<32x128xf32, #tpu.memory_space<vmem>>, %arg2: memref<128x128xf32, #tpu.memory_space<vmem>>, %arg3: memref<32x128xf32, #tpu.memory_space<vmem>>) attributes {dimension_semantics = [#tpu.dimension_semantics<parallel>], iteration_bounds = array<i64: 4>, scalar_prefetch = 0 : i64, scratch_operands = 0 : i64, tpu.core_type = #tpu.core_type<tc>, window_params = [{transform_indices = @transform_0, window_bounds = array<i64: 32, 128>}, {pipeline_mode = #tpu.pipeline_mode<synchronous>, transform_indices = @transform_1, window_bounds = array<i64: 128, 128>}, {transform_indices = @transform_2, window_bounds = array<i64: 32, 128>}]} {
    %c0 = arith.constant 0 : index
    %c0_0 = arith.constant 0 : index
    %0 = vector.load %arg1[%c0, %c0_0] : memref<32x128xf32, #tpu.memory_space<vmem>>, vector<32x128xf32>
    %c0_1 = arith.constant 0 : index
    %c0_2 = arith.constant 0 : index
    %1 = vector.load %arg2[%c0_1, %c0_2] : memref<128x128xf32, #tpu.memory_space<vmem>>, vector<128x128xf32>
    %cst = arith.constant dense<0.000000e+00> : vector<32x128xf32>
    %2 = tpu.matmul %0, %1, %cst {dimension_numbers = #tpu.dot_dimension_numbers<[1], [0], [0], [1], [0, 0, 1, 1], [], []>} : vector<32x128xf32>, vector<128x128xf32>, vector<32x128xf32> -> vector<32x128xf32>
    %c0_3 = arith.constant 0 : index
    %c0_4 = arith.constant 0 : index
    %3 = vector.load %arg3[%c0_3, %c0_4] : memref<32x128xf32, #tpu.memory_space<vmem>>, vector<32x128xf32>
    tpu.vector_store %arg3[%c0_3, %c0_4], %2 {strides = array<i32>} : memref<32x128xf32, #tpu.memory_space<vmem>>, vector<32x128xf32>,
    return
  }
  func.func @transform_0(%arg0: i32) -> (i32, i32) {
    %c0_i32 = arith.constant 0 : i32
    %c0_i32_0 = arith.constant 0 : i32
    return %arg0, %c0_i32 : i32, i32
  }
  func.func @transform_1(%arg0: i32) -> (i32, i32) {
    %c0_i32 = arith.constant 0 : i32
    %c0_i32_0 = arith.constant 0 : i32
    %c0_i32_1 = arith.constant 0 : i32
    return %c0_i32, %c0_i32_0 : i32, i32
  }
  func.func @transform_2(%arg0: i32) -> (i32, i32) {
    %c0_i32 = arith.constant 0 : i32
    %c0_i32_0 = arith.constant 0 : i32
    return %arg0, %c0_i32 : i32, i32
  }
}

</mosaic_0001>

<llo_original>
// kernel: tpu_custom_call.1
$region0: #{tpu_custom_call.1}
  #allocation0 [shape = 'u32[]', space=smem, size = 0x4, offset = 0x4, fixed_abs, tag = 'smem constant byte address 0x4 - core index']
  #allocation1 [shape = 'u32[144,128]{1,0:T(1,128)}', space=vmem, size = 0x12000, scoped, tag = 'internal scratch']
  %s0 = inlined_call_operand.hbm [shape: f32[128,128], index: 0, kind: input, shape index: {}]
  %s1 = inlined_call_operand.hbm [shape: f32[128,128], index: 1, kind: input, shape index: {}]
  %s2 = inlined_call_operand.hbm [shape: f32[128,128], index: 2, kind: output, shape index: {}]
  %s3 = sld [smem:[#allocation0]]
  $region49: #{tpu_custom_call.1} parent=0
    _
  %s5 = ssub.s32 1, %s3
  %s6 = scalar_select 0, %s5, %s3
  $region1: #{tpu_custom_call.1} parent=0
    #allocation2 [shape = 'u8[32768]{0}', space=vmem, size = 0x8000, scoped, tag = 'input window, operand 0']
    #allocation3 [shape = 's32[2]{0}', space=sflag, size = 0x8, scoped, tag = 'scoped memory for tpu_custom_call.1']
    #allocation4 [shape = 's32[2]{0}', space=sflag, size = 0x8, scoped, tag = 'scoped memory for tpu_custom_call.1']
    #allocation5 [shape = 'u8[65536]{0}', space=vmem, size = 0x10000, scoped, tag = 'input window, operand 1, single buffered']
    #allocation6 [shape = 's32[1]{0}', space=sflag, size = 0x4, scoped, tag = 'scoped memory for tpu_custom_call.1']
    #allocation7 [shape = 'u8[32768]{0}', space=vmem, size = 0x8000, scoped, tag = 'output window, operand 0']
    %7 = vsyncpa [#allocation3], 0
    %s8 = scalar_lea.sflag [#allocation3], 1
    %9 = vsyncpa %s8, 0
    %10 = vsyncpa [#allocation6], 0
    %11 = vsyncpa [#allocation4], 0
    %s12 = scalar_lea.sflag [#allocation4], 1
    %13 = vsyncpa %s12, 0
    loop: start=0, step=1, limit=6
    $region2: #{tpu_custom_call.1} parent=1 // loop_pre_header
      _
    $region3: #{tpu_custom_call.1} parent=1 // loop_header
      %s15 = sphi 0, %s19
      %p16 = scmp.ge.s32.totalorder %s15, 6
      %s25 = sphi 0, %s27
      %s28 = sphi 0, %s25
      %s29 = sphi 0, %s28
      %s45 = sphi 0, %s29
      %s49 = sphi 0, %s49
      %s51 = sphi 0, %s49
      %s52 = sphi 0, %s51
      %s66 = sphi 0, %s52
      %s72 = sphi 0, %s74
      %s75 = sphi 0, %s72
      %s76 = sphi 0, %s75
      %s92 = sphi 0, %s76
    $region4: #{tpu_custom_call.1} parent=1 // loop_header_branch
      %18 = sbr.rel (%p16) target = $region8
    $region5: #{tpu_custom_call.1} parent=1 // loop_body
      %s20 = ssub.s32 %s15, 1
      %s21 = ssub.s32 %s15, 2
      %s22 = sadd.s32 %s15, 1
      %s23 = ssub.s32 %s15, %s22
      %p24 = scmp.eq.s32.totalorder %s23, 0
      %s26 = sadd.s32 %s25, 1
      %s27 = scalar_select %p24, %s25, %s26
      %p30 = pneg %p24
      %p31 = scmp.eq.s32.totalorder %s15, 3
      %p32 = por %p30, %p31
      %p33 = scmp.ne.s32.totalorder %s25, %s28
      %p34 = scmp.eq.s32.totalorder %s15, 0
      %p35 = por %p33, %p34
      %p36 = scmp.ne.s32.totalorder %s25, %s28
      %p37 = scmp.eq.s32.totalorder %s20, 3
      %p38 = por %p36, %p37
      %p39 = scmp.ne.s32.totalorder %s28, %s29
      %p40 = scmp.eq.s32.totalorder %s20, 0
      %p41 = por %p39, %p40
      %p42 = scmp.ne.s32.totalorder %s28, %s29
      %p43 = scmp.eq.s32.totalorder %s21, 3
      %p44 = por %p42, %p43
      %p46 = scmp.ne.s32.totalorder %s29, %s45
      %p47 = scmp.eq.s32.totalorder %s21, 0
      %p48 = por %p46, %p47
      %s50 = sadd.s32 %s49, 1
      %p53 = scmp.eq.s32.totalorder %s15, 3
      %p54 = scmp.ne.s32.totalorder %s49, %s51
      %p55 = scmp.eq.s32.totalorder %s15, 0
      %p56 = por %p54, %p55
      %p57 = scmp.ne.s32.totalorder %s49, %s51
      %p58 = scmp.eq.s32.totalorder %s20, 3
      %p59 = por %p57, %p58
      %p60 = scmp.ne.s32.totalorder %s51, %s52
      %p61 = scmp.eq.s32.totalorder %s20, 0
      %p62 = por %p60, %p61
      %p63 = scmp.ne.s32.totalorder %s51, %s52
      %p64 = scmp.eq.s32.totalorder %s21, 3
      %p65 = por %p63, %p64
      %p67 = scmp.ne.s32.totalorder %s52, %s66
      %p68 = scmp.eq.s32.totalorder %s21, 0
      %p69 = por %p67, %p68
      %s70 = ssub.s32 %s15, %s22
      %p71 = scmp.eq.s32.totalorder %s70, 0
      %s73 = sadd.s32 %s72, 1
      %s74 = scalar_select %p71, %s72, %s73
      %p77 = pneg %p71
      %p78 = scmp.eq.s32.totalorder %s15, 3
      %p79 = por %p77, %p78
      %p80 = scmp.ne.s32.totalorder %s72, %s75
      %p81 = scmp.eq.s32.totalorder %s15, 0
      %p82 = por %p80, %p81
      %p83 = scmp.ne.s32.totalorder %s72, %s75
      %p84 = scmp.eq.s32.totalorder %s20, 3
      %p85 = por %p83, %p84
      %p86 = scmp.ne.s32.totalorder %s75, %s76
      %p87 = scmp.eq.s32.totalorder %s20, 0
      %p88 = por %p86, %p87
      %p89 = scmp.ne.s32.totalorder %s75, %s76
      %p90 = scmp.eq.s32.totalorder %s21, 3
      %p91 = por %p89, %p90
      %p93 = scmp.ne.s32.totalorder %s76, %s92
      %p94 = scmp.eq.s32.totalorder %s21, 0
      %p95 = por %p93, %p94
      %p96 = scmp.le.s32.totalorder 1, %s15
      %p97 = scmp.lt.s32.totalorder %s15, 5
      %p98 = pnand %p96, %p97
      %p99 = pneg %p98
      // Predicated region
      $region9: #{tpu_custom_call.1} parent=5 // pred_check
        _
      $region10: #{tpu_custom_call.1} parent=5 // pred_check_branch
        %101 = sbr.rel (%p98) target = $region12
      $region11: #{tpu_custom_call.1} parent=5 // pred_region
        %s102 = ssub.s32 %s15, 1
        // Predicated region
        $region13: #{tpu_custom_call.1} parent=11 // pred_check
          %p103 = pneg %p62
        $region14: #{tpu_custom_call.1} parent=11 // pred_check_branch
          %105 = sbr.rel (%p103) target = $region16
        $region15: #{tpu_custom_call.1} parent=11 // pred_region
          %s107 = ssub.s32 2048, 2048
          %108 = vsyncadd [#allocation6], %s107
          %s109 = sshll.u32 [#allocation5], 4
          %s110 = int_to_ptr.vmem [resolvable:$true] %s109
          %115 = dma.hbm_to_vmem [thread:$0]  %s1, 2048, %s110, [#allocation6], 128, 128, 8
        $region16: #{tpu_custom_call.1} parent=11 // pred_fallthru
          _
      $region12: #{tpu_custom_call.1} parent=5 // pred_fallthru
        _
      %p116 = scmp.lt.s32.totalorder %s15, 4
      // Predicated region
      $region17: #{tpu_custom_call.1} parent=5 // pred_check
        %p117 = pneg %p116
      $region18: #{tpu_custom_call.1} parent=5 // pred_check_branch
        %119 = sbr.rel (%p117) target = $region20
      $region19: #{tpu_custom_call.1} parent=5 // pred_region
        // Predicated region
        $region21: #{tpu_custom_call.1} parent=19 // pred_check
          %p120 = pneg %p35
        $region22: #{tpu_custom_call.1} parent=19 // pred_check_branch
          %122 = sbr.rel (%p120) target = $region24
        $region23: #{tpu_custom_call.1} parent=19 // pred_region
          %s123 = sand.u32 %s25, 1
          %s124 = scalar_lea.sflag [#allocation3], %s123
          %s125 = sand.u32 %s25, 1
          %s126 = smul.addr %s125, 32
          %s127 = scalar_lea.vmem [#allocation2], %s126
          %s128 = smul.u32 4, %s15
          %s130 = ssub.s32 512, 512
          %131 = vsyncadd %s124, %s130
          %s132 = smul.addr %s128, 128
          %s133 = scalar_lea.hbm %s0, %s132
          %s134 = sshll.u32 %s127, 4
          %s135 = int_to_ptr.vmem [resolvable:$true] %s134
          %140 = dma.hbm_to_vmem [thread:$0]  %s133, 512, %s135, %s124, 128, 128, 8
        $region24: #{tpu_custom_call.1} parent=19 // pred_fallthru
          _
      $region20: #{tpu_custom_call.1} parent=5 // pred_fallthru
        _
      %p141 = scmp.le.s32.totalorder 1, %s15
      %p142 = scmp.lt.s32.totalorder %s15, 5
      %p143 = pnand %p141, %p142
      %p144 = pneg %p143
      // Predicated region
      $region25: #{tpu_custom_call.1} parent=5 // pred_check
        _
      $region26: #{tpu_custom_call.1} parent=5 // pred_check_branch
        %146 = sbr.rel (%p143) target = $region28
      $region27: #{tpu_custom_call.1} parent=5 // pred_region
        %s147 = ssub.s32 %s15, 1
        %s148 = sand.u32 %s28, 1
        %s149 = scalar_lea.sflag [#allocation3], %s148
        %s150 = sand.u32 %s28, 1
        %s151 = smul.addr %s150, 32
        %s152 = scalar_lea.vmem [#allocation2], %s151
        // Predicated region
        $region29: #{tpu_custom_call.1} parent=27 // pred_check
          %p153 = pneg %p41
        $region30: #{tpu_custom_call.1} parent=27 // pred_check_branch
          %155 = sbr.rel (%p153) target = $region32
        $region31: #{tpu_custom_call.1} parent=27 // pred_region
          %156 = dma.done %s149, 512
        $region32: #{tpu_custom_call.1} parent=27 // pred_fallthru
          _
        // Predicated region
        $region33: #{tpu_custom_call.1} parent=27 // pred_check
          %p157 = pneg %p62
        $region34: #{tpu_custom_call.1} parent=27 // pred_check_branch
          %159 = sbr.rel (%p157) target = $region36
        $region35: #{tpu_custom_call.1} parent=27 // pred_region
          %160 = dma.done [#allocation6], 2048
        $region36: #{tpu_custom_call.1} parent=27 // pred_fallthru
          _
        %s161 = sand.u32 %s28, 1
        %s162 = scalar_lea.sflag [#allocation3], %s161
        %s163 = sand.u32 %s28, 1
        %s164 = smul.addr %s163, 32
        %s165 = scalar_lea.vmem [#allocation2], %s164
        %p166 = pneg %p41
        %p167 = pneg %p38
        %p168 = pneg %p62
        %p169 = pneg %p59
        %p170 = pneg %p88
        %p171 = pneg %p85
        %s172 = sand.u32 %s75, 1
        %s173 = scalar_lea.sflag [#allocation4], %s172
        %s174 = sand.u32 %s75, 1
        %s175 = smul.addr %s174, 32
        %s176 = scalar_lea.vmem [#allocation7], %s175
        %s177 = smul.u32 4, %s20
        %s178 = smul.u32 4, %s20
        %v179 = vld [vmem:[%s152] sm:$0xff]
        %v180 = vld [vmem:[%s152 + $0x8] sm:$0xff]
        %v181 = vld [vmem:[%s152 + $0x10] sm:$0xff]
        %v182 = vld [vmem:[%s152 + $0x18] sm:$0xff]
        %v183 = vld [vmem:[#allocation5] sm:$0xff]
        %v184 = vld [vmem:[#allocation5 + $0x8] sm:$0xff]
        %v185 = vld [vmem:[#allocation5 + $0x10] sm:$0xff]
        %v186 = vld [vmem:[#allocation5 + $0x18] sm:$0xff]
        %v187 = vld [vmem:[#allocation5 + $0x20] sm:$0xff]
        %v188 = vld [vmem:[#allocation5 + $0x28] sm:$0xff]
        %v189 = vld [vmem:[#allocation5 + $0x30] sm:$0xff]
        %v190 = vld [vmem:[#allocation5 + $0x38] sm:$0xff]
        %v191 = vld [vmem:[#allocation5 + $0x40] sm:$0xff]
        %v192 = vld [vmem:[#allocation5 + $0x48] sm:$0xff]
        %v193 = vld [vmem:[#allocation5 + $0x50] sm:$0xff]
        %v194 = vld [vmem:[#allocation5 + $0x58] sm:$0xff]
        %v195 = vld [vmem:[#allocation5 + $0x60] sm:$0xff]
        %v196 = vld [vmem:[#allocation5 + $0x68] sm:$0xff]
        %v197 = vld [vmem:[#allocation5 + $0x70] sm:$0xff]
        %v198 = vld [vmem:[#allocation5 + $0x78] sm:$0xff]
        %199 = vmatprep.subr.mxu0 0.0
        %200 = vmatpush1.msra.mxu0 %v198
        %201 = vmatprep.subr.mxu0 0.0
        %202 = vmatpush1.msra.mxu0 %v197
        %203 = vmatprep.subr.mxu0 0.0
        %204 = vmatpush1.msra.mxu0 %v196
        %205 = vmatprep.subr.mxu0 0.0
        %206 = vmatpush1.msra.mxu0 %v195
        %207 = vmatprep.subr.mxu0 0.0
        %208 = vmatpush1.msra.mxu0 %v194
        %209 = vmatprep.subr.mxu0 0.0
        %210 = vmatpush1.msra.mxu0 %v193
        %211 = vmatprep.subr.mxu0 0.0
        %212 = vmatpush1.msra.mxu0 %v192
        %213 = vmatprep.subr.mxu0 0.0
        %214 = vmatpush1.msra.mxu0 %v191
        %215 = vmatprep.subr.mxu0 0.0
        %216 = vmatpush1.msra.mxu0 %v190
        %217 = vmatprep.subr.mxu0 0.0
        %218 = vmatpush1.msra.mxu0 %v189
        %219 = vmatprep.subr.mxu0 0.0
        %220 = vmatpush1.msra.mxu0 %v188
        %221 = vmatprep.subr.mxu0 0.0
        %222 = vmatpush1.msra.mxu0 %v187
        %223 = vmatprep.subr.mxu0 0.0
        %224 = vmatpush1.msra.mxu0 %v186
        %225 = vmatprep.subr.mxu0 0.0
        %226 = vmatpush1.msra.mxu0 %v185
        %227 = vmatprep.subr.mxu0 0.0
        %228 = vmatpush1.msra.mxu0 %v184
        %229 = vmatprep.subr.mxu0 0.0
        %230 = vmatpush1.msra.mxu0 %v183
        %231 = vmatprep.subr.mxu0 0.0
        %232 = vmatpush2.msra.mxu0 0.0
        %233 = vmatprep.subr.mxu0 0.0
        %234 = vmatpush2.msra.mxu0 0.0
        %235 = vmatprep.subr.mxu0 0.0
        %236 = vmatpush2.msra.mxu0 0.0
        %237 = vmatprep.subr.mxu0 0.0
        %238 = vmatpush2.msra.mxu0 0.0
        %239 = vmatprep.subr.mxu0 0.0
        %240 = vmatpush2.msra.mxu0 0.0
        %241 = vmatprep.subr.mxu0 0.0
        %242 = vmatpush2.msra.mxu0 0.0
        %243 = vmatprep.subr.mxu0 0.0
        %244 = vmatpush2.msra.mxu0 0.0
        %245 = vmatprep.subr.mxu0 0.0
        %246 = vmatpush2.msra.mxu0 0.0
        %247 = vmatprep.subr.mxu0 0.0
        %248 = vmatpush2.msra.mxu0 0.0
        %249 = vmatprep.subr.mxu0 0.0
        %250 = vmatpush2.msra.mxu0 0.0
        %251 = vmatprep.subr.mxu0 0.0
        %252 = vmatpush2.msra.mxu0 0.0
        %253 = vmatprep.subr.mxu0 0.0
        %254 = vmatpush2.msra.mxu0 0.0
        %255 = vmatprep.subr.mxu0 0.0
        %256 = vmatpush2.msra.mxu0 0.0
        %257 = vmatprep.subr.mxu0 0.0
        %258 = vmatpush2.msra.mxu0 0.0
        %259 = vmatprep.subr.mxu0 0.0
        %260 = vmatpush2.msra.mxu0 0.0
        %261 = vmatprep.subr.mxu0 0.0
        %262 = vmatpush2.msra.mxu0 0.0
        %263 = vmatprep.mubr.f32.mxu0 0.0
        %264 = vmatmul.mubr.f32.gmra.mxu0 %v179
        %v265 = vpop.f32.mrf.mxu0
        %v266 = vadd.f32 0.0, %v265
        %v267 = vpop.f32.mrf.mxu0
        %268 = vmatprep.mubr.f32.mxu0 0.0
        %269 = vmatmul.mubr.f32.gmra.mxu0 %v180
        %v270 = vpop.f32.mrf.mxu0
        %v271 = vadd.f32 0.0, %v270
        %v272 = vpop.f32.mrf.mxu0
        %273 = vmatprep.mubr.f32.mxu0 0.0
        %274 = vmatmul.mubr.f32.gmra.mxu0 %v181
        %v275 = vpop.f32.mrf.mxu0
        %v276 = vadd.f32 0.0, %v275
        %v277 = vpop.f32.mrf.mxu0
        %278 = vmatprep.mubr.f32.mxu0 0.0
        %279 = vmatmul.mubr.f32.gmra.mxu0 %v182
        %v280 = vpop.f32.mrf.mxu0
        %v281 = vadd.f32 0.0, %v280
        %v282 = vpop.f32.mrf.mxu0
        %283 = vdwg.mxu0
        %284 = vst [vmem:[%s176] sm:$0xff] %v266
        %285 = vst [vmem:[%s176 + $0x8] sm:$0xff] %v271
        %286 = vst [vmem:[%s176 + $0x10] sm:$0xff] %v276
        %287 = vst [vmem:[%s176 + $0x18] sm:$0xff] %v281
        %s288 = sand.u32 %s75, 1
        %s289 = scalar_lea.sflag [#allocation4], %s288
        %s290 = sand.u32 %s75, 1
        %s291 = smul.addr %s290, 32
        %s292 = scalar_lea.vmem [#allocation7], %s291
        // Predicated region
        $region37: #{tpu_custom_call.1} parent=27 // pred_check
          %p293 = pneg %p85
        $region38: #{tpu_custom_call.1} parent=27 // pred_check_branch
          %295 = sbr.rel (%p293) target = $region40
        $region39: #{tpu_custom_call.1} parent=27 // pred_region
          %s296 = smul.u32 4, %s20
          %s298 = ssub.s32 512, 512
          %299 = vsyncadd %s289, %s298
          %s300 = smul.addr %s296, 128
          %s301 = scalar_lea.hbm %s2, %s300
          %s302 = sshll.u32 %s292, 4
          %s303 = int_to_ptr.vmem [resolvable:$true] %s302
          %308 = dma.vmem_to_hbm [thread:$0]  %s303, 512, %s301, %s289, 128, 128, 8
        $region40: #{tpu_custom_call.1} parent=27 // pred_fallthru
          _
      $region28: #{tpu_custom_call.1} parent=5 // pred_fallthru
        _
      %p309 = scmp.le.s32.totalorder 2, %s15
      // Predicated region
      $region41: #{tpu_custom_call.1} parent=5 // pred_check
        %p310 = pneg %p309
      $region42: #{tpu_custom_call.1} parent=5 // pred_check_branch
        %312 = sbr.rel (%p310) target = $region44
      $region43: #{tpu_custom_call.1} parent=5 // pred_region
        %s313 = ssub.s32 %s15, 2
        // Predicated region
        $region45: #{tpu_custom_call.1} parent=43 // pred_check
          %p314 = pneg %p91
        $region46: #{tpu_custom_call.1} parent=43 // pred_check_branch
          %316 = sbr.rel (%p314) target = $region48
        $region47: #{tpu_custom_call.1} parent=43 // pred_region
          %s317 = sand.u32 %s76, 1
          %s318 = scalar_lea.sflag [#allocation4], %s317
          %s319 = sand.u32 %s76, 1
          %s320 = smul.addr %s319, 32
          %s321 = scalar_lea.vmem [#allocation7], %s320
          %322 = dma.done %s318, 512
        $region48: #{tpu_custom_call.1} parent=43 // pred_fallthru
          _
      $region44: #{tpu_custom_call.1} parent=5 // pred_fallthru
        _
    $region6: #{tpu_custom_call.1} parent=1 // loop_footer
      %s19 = sadd.s32 1, %s15
    $region7: #{tpu_custom_call.1} parent=1 // loop_footer_branch
      %14 = sbr.rel target = $region3
    $region8: #{tpu_custom_call.1} parent=1 // loop_exit
      _
    %323 = vsyncpa [#allocation3], 1
    %s324 = scalar_lea.sflag [#allocation3], 1
    %325 = vsyncpa %s324, 1
    %326 = vsyncpa [#allocation6], 1
    %327 = vsyncpa [#allocation4], 1
    %s328 = scalar_lea.sflag [#allocation4], 1
    %329 = vsyncpa %s328, 1

</llo_original>
